<compile_context>
chip_gen: v7x
topology: tpu7x:2x2x1
jax: 0.10.0
libtpu: 0.0.40
codegen_flags: <defaults>
</compile_context>

<pallas_src>
import functools

import jax
import jax.numpy as jnp
from jax import lax
from jax.experimental import pallas as pl
from jax.experimental.pallas import tpu as pltpu

LANES = 128
MAX_BLOCK_ROWS = 2048   # 2048 x 128 x 4 B = 1 MiB per f32 input buffer (double-buffered)
SUB_ROWS = 512          # fused load->abs->add slab; MAX_BLOCK_ROWS % SUB_ROWS == 0


def _num_tensorcores() -> int:
    """Best-effort TensorCores-per-device count; falls back to 1 (v5e/v6e)."""
    try:
        info = pltpu.get_tpu_info()
        for attr in ("num_cores", "core_count", "num_tensorcores", "tensorcores_per_chip"):
            v = getattr(info, attr, None)
            if isinstance(v, int) and v > 1:
                return v
    except Exception:
        pass
    return 1


def _abs_sum_kernel(x_ref, o_ref, acc_ref, *, block_rows, sub_rows, nblocks,
                    steps_per_split, tail_rows, num_splits):
    c = pl.program_id(0)                 # split ("parallel") index
    i = pl.program_id(1)                 # sequential reduction step ("arbitrary")
    b = c * steps_per_split + i          # global, unclamped block index

    @pl.when(i == 0)
    def _():
        acc_ref[...] = jnp.zeros_like(acc_ref)

    nsub = block_rows // sub_rows        # static (sub_rows always divides block_rows)

    def fold_full():
        # Steady state: fused load -> abs (input dtype) -> cast -> add per slab.
        # acc_ref is (sub_rows, 128): each += is sub_rows/8 independent vreg adds, and
        # the dependent chain per position is only `nsub` links per block, so the fold
        # stays hidden under the HBM DMA of the next block.
        for j in range(nsub):            # statically unrolled, static slice offsets
            lo = j * sub_rows
            xb = jnp.abs(x_ref[pl.ds(lo, sub_rows), :]).astype(jnp.float32)
            acc_ref[...] += xb

    def fold_tail():
        # Only the single overhang block ever takes this path.  Full sub-chunks stay
        # unmasked; sub-chunks entirely past the valid rows are skipped at trace time.
        for j in range(nsub):
            lo = j * sub_rows
            if lo >= tail_rows:
                break
            xb = jnp.abs(x_ref[pl.ds(lo, sub_rows), :]).astype(jnp.float32)
            if lo + sub_rows > tail_rows:
                ridx = lax.broadcasted_iota(jnp.int32, (sub_rows, LANES), 0)
                xb = jnp.where(ridx < (tail_rows - lo), xb, 0.0)
            acc_ref[...] += xb

    has_tail = tail_rows > 0                                   # static
    has_dup = (num_splits * steps_per_split) > nblocks         # static
    full_blocks = nblocks - 1 if has_tail else nblocks

    if has_tail or has_dup:
        @pl.when(b < full_blocks)
        def _():
            fold_full()

        if has_tail:
            @pl.when(b == nblocks - 1)
            def _():
                fold_tail()
        # Blocks with b >= nblocks are clamped duplicates: skipped entirely.
    else:
        fold_full()

    # Epilogue: one cross-lane/sublane reduce per split, scalar result into SMEM.
    @pl.when(i == pl.num_programs(1) - 1)
    def _():
        o_ref[0, 0] = jnp.sum(acc_ref[...])


def abs_sum_loss(x: jax.Array) -> jax.Array:
    """Sum of absolute values over all elements (matches torch.sum(torch.abs(x)))."""
    n = int(x.size)
    flat = x.reshape(-1)                    # native dtype; abs/cast happen in-kernel

    # Lane alignment only: the pad is taken only when n % 128 != 0 (zero-pad is exact
    # for an abs-sum).  All other raggedness (sublane / block overhang) is in-kernel.
    # TODO(synk): a manual-DMA (memory_space=pl.ANY) path could mask the <128-element
    # lane tail in-kernel too and avoid this full-array copy for ragged sizes.
    if n % LANES != 0:
        flat = jnp.pad(flat, (0, LANES - n % LANES))
    rows = flat.size // LANES
    x2d = flat.reshape(rows, LANES)         # contiguous, layout-preserving reshape

    block_rows = min(rows, MAX_BLOCK_ROWS)
    # sub_rows must divide block_rows exactly (sub-chunk slices must stay in-bounds of
    # the VMEM block buffer).  block_rows == MAX_BLOCK_ROWS is a multiple of SUB_ROWS;
    # otherwise (single-block input) fold the whole block in one slab.
    sub_rows = SUB_ROWS if block_rows % SUB_ROWS == 0 else block_rows

    nblocks = (rows + block_rows - 1) // block_rows
    tail_rows = rows - (nblocks - 1) * block_rows
    if tail_rows == block_rows:
        tail_rows = 0                       # last block is full -> no masked path

    num_splits = _num_tensorcores() if nblocks > 1 else 1
    num_splits = max(1, min(num_splits, nblocks))
    steps = (nblocks + num_splits - 1) // num_splits

    def x_index_map(c, i):
        b = c * steps + i
        # Clamp past-the-end blocks (uneven split) onto the last real block; their
        # contribution is skipped in-kernel.
        return (jnp.minimum(b, nblocks - 1), 0)

    kernel = functools.partial(
        _abs_sum_kernel,
        block_rows=block_rows,
        sub_rows=sub_rows,
        nblocks=nblocks,
        steps_per_split=steps,
        tail_rows=tail_rows,
        num_splits=num_splits,
    )

    partials = pl.pallas_call(
        kernel,
        out_shape=jax.ShapeDtypeStruct((num_splits, 1), jnp.float32),
        grid_spec=pltpu.PrefetchScalarGridSpec(
            num_scalar_prefetch=0,
            grid=(num_splits, steps),
            in_specs=[pl.BlockSpec((block_rows, LANES), x_index_map)],
            out_specs=pl.BlockSpec((1, 1), lambda c, i: (c, 0),
                                   memory_space=pltpu.SMEM),
            scratch_shapes=[pltpu.VMEM((sub_rows, LANES), jnp.float32)],
        ),
        compiler_params=pltpu.CompilerParams(
            # TODO(synk): on v7x verify the leading axis actually shards across both
            # TensorCores; if not, switch to (pltpu.CORE_PARALLEL, pltpu.ARBITRARY).
            dimension_semantics=("parallel", "arbitrary"),
        ),
        cost_estimate=pl.CostEstimate(
            flops=2 * n,
            transcendentals=0,
            bytes_accessed=n * x.dtype.itemsize + 4 * num_splits,
        ),
    )(x2d)

    # Sum the (at most num_splits) per-split partial scalars outside the kernel.
    return jnp.sum(partials)


if __name__ == "__main__":
    key = jax.random.PRNGKey(0)
    x = jax.random.normal(key, (2, 4, 16, 16), dtype=jnp.float32)

    result = abs_sum_loss(x)
    jax.block_until_ready(result)

    # Reference check against plain JAX.
    ref = jnp.sum(jnp.abs(x))
    assert jnp.allclose(result, ref, rtol=1e-5, atol=1e-5), (result, ref)

    print("KERNEL_OK")
</pallas_src>

<mosaic_0001>
module attributes {stable_mosaic.version = 11 : i64} {
  func.func @_abs_sum_kernel(%arg0: i32, %arg1: i32, %arg2: memref<16x128xf32, #tpu.memory_space<vmem>>, %arg3: memref<1x1xf32, #tpu.memory_space<smem>>, %arg4: memref<16x128xf32, #tpu.memory_space<vmem>>) attributes {dimension_semantics = [#tpu.dimension_semantics<parallel>, #tpu.dimension_semantics<arbitrary>], iteration_bounds = array<i64: 1, 1>, scalar_prefetch = 0 : i64, scratch_operands = 1 : i64, tpu.core_type = #tpu.core_type<tc>, window_params = [{transform_indices = @transform_0, window_bounds = array<i64: 16, 128>}, {transform_indices = @transform_1, window_bounds = array<i64: 1, 1>}]} {
    %c0_i32 = arith.constant 0 : i32
    %0 = arith.cmpi eq, %arg1, %c0_i32 : i32
    %1 = arith.extui %0 : i1 to i32
    %c0_i32_0 = arith.constant 0 : i32
    %2 = arith.cmpi ne, %1, %c0_i32_0 : i32
    scf.if %2 {
      %cst = arith.constant 0.000000e+00 : f32
      %11 = vector.broadcast %cst : f32 to vector<16x128xf32>
      %c0_8 = arith.constant 0 : index
      %c0_9 = arith.constant 0 : index
      %12 = vector.load %arg4[%c0_8, %c0_9] : memref<16x128xf32, #tpu.memory_space<vmem>>, vector<16x128xf32>
      tpu.vector_store %arg4[%c0_8, %c0_9], %11 {strides = array<i32>} : memref<16x128xf32, #tpu.memory_space<vmem>>, vector<16x128xf32>,
    } else {
    }
    %c0 = arith.constant 0 : index
    %c0_1 = arith.constant 0 : index
    %3 = vector.load %arg2[%c0, %c0_1] : memref<16x128xf32, #tpu.memory_space<vmem>>, vector<16x128xf32>
    %4 = math.absf %3 : vector<16x128xf32>
    %c0_2 = arith.constant 0 : index
    %c0_3 = arith.constant 0 : index
    %5 = vector.load %arg4[%c0_2, %c0_3] : memref<16x128xf32, #tpu.memory_space<vmem>>, vector<16x128xf32>
    %6 = arith.addf %5, %4 : vector<16x128xf32>
    %c0_4 = arith.constant 0 : index
    %c0_5 = arith.constant 0 : index
    %7 = vector.load %arg4[%c0_4, %c0_5] : memref<16x128xf32, #tpu.memory_space<vmem>>, vector<16x128xf32>
    tpu.vector_store %arg4[%c0_4, %c0_5], %6 {strides = array<i32>} : memref<16x128xf32, #tpu.memory_space<vmem>>, vector<16x128xf32>,
    %c0_i32_6 = arith.constant 0 : i32
    %8 = arith.cmpi eq, %arg1, %c0_i32_6 : i32
    %9 = arith.extui %8 : i1 to i32
    %c0_i32_7 = arith.constant 0 : i32
    %10 = arith.cmpi ne, %9, %c0_i32_7 : i32
    scf.if %10 {
      %c0_8 = arith.constant 0 : index
      %c0_9 = arith.constant 0 : index
      %11 = vector.load %arg4[%c0_8, %c0_9] : memref<16x128xf32, #tpu.memory_space<vmem>>, vector<16x128xf32>
      %12 = vector.shape_cast %11 : vector<16x128xf32> to vector<1x16x128xf32>
      %cst = arith.constant dense<0.000000e+00> : vector<1xf32>
      %13 = vector.multi_reduction <add>, %12, %cst [1, 2] : vector<1x16x128xf32> to vector<1xf32>
      %14 = vector.shape_cast %13 : vector<1xf32> to vector<1x1x1xf32>
      %15 = vector.extract %14[0, 0, 0] : f32 from vector<1x1x1xf32>
      %c0_10 = arith.constant 0 : index
      %c0_11 = arith.constant 0 : index
      %16 = memref.load %arg3[%c0_10, %c0_11] : memref<1x1xf32, #tpu.memory_space<smem>>
      memref.store %15, %arg3[%c0_10, %c0_11] : memref<1x1xf32, #tpu.memory_space<smem>>
    } else {
    }
    return
  }
  func.func @transform_0(%arg0: i32, %arg1: i32) -> (i32, i32) {
    %c1_i32 = arith.constant 1 : i32
    %0 = arith.muli %arg0, %c1_i32 : i32
    %1 = arith.addi %0, %arg1 : i32
    %c0_i32 = arith.constant 0 : i32
    %2 = arith.minsi %1, %c0_i32 : i32
    %c0_i32_0 = arith.constant 0 : i32
    %c0_i32_1 = arith.constant 0 : i32
    return %2, %c0_i32_0 : i32, i32
  }
  func.func @transform_1(%arg0: i32, %arg1: i32) -> (i32, i32) {
    %c0_i32 = arith.constant 0 : i32
    %c0_i32_0 = arith.constant 0 : i32
    return %arg0, %c0_i32 : i32, i32
  }
}

</mosaic_0001>

<llo_original>
// kernel: tpu_custom_call.1
$region0: #{tpu_custom_call.1}
  #allocation0 [shape = 'u32[]', space=smem, size = 0x4, offset = 0x4, fixed_abs, tag = 'smem constant byte address 0x4 - core index']
  #allocation1 [shape = 'u32[144,128]{1,0:T(1,128)}', space=vmem, size = 0x12000, scoped, tag = 'internal scratch']
  #allocation2 [shape = 'f32[16,128]{1,0:T(8,128)}', space=vmem, size = 0x2000, scoped, tag = 'scratch operand']
  %s0 = inlined_call_operand.hbm [shape: f32[16,128], index: 0, kind: input, shape index: {}]
  %s1 = inlined_call_operand.hbm [shape: f32[1,1], index: 1, kind: output, shape index: {}]
  %s2 = sld [smem:[#allocation0]]
  $region26: #{tpu_custom_call.1} parent=0
    _
  %s4 = ssub.s32 1, %s2
  %s5 = scalar_select 0, %s4, %s2
  $region1: #{tpu_custom_call.1} parent=0
    #allocation3 [shape = 'u8[8192]{0}', space=vmem, size = 0x2000, scoped, tag = 'input window, operand 0, single buffered']
    #allocation4 [shape = 's32[1]{0}', space=sflag, size = 0x4, scoped, tag = 'scoped memory for tpu_custom_call.1']
    #allocation5 [shape = 's32[1]{0}', space=sflag, size = 0x4, scoped, tag = 'scoped memory for tpu_custom_call.1']
    #allocation6 [shape = 'u8[512]{0}', space=smem, size = 0x200, scoped, tag = 'output window, operand 0, single buffered']
    %6 = vsyncpa [#allocation4], 0
    %7 = vsyncpa [#allocation5], 0
    // Predicated region
    $region2: #{tpu_custom_call.1} parent=1 // pred_check
      _
    $region3: #{tpu_custom_call.1} parent=1 // pred_check_branch
      %9 = sbr.rel (0) target = $region5
    $region4: #{tpu_custom_call.1} parent=1 // pred_region
      %s10 = sadd.s32 0, 0
      %p11 = scmp.lt.s32.totalorder %s10, 0
      %s12 = scalar_select %p11, %s10, 0
      %s13 = smul.u32 2, %s12
      %s15 = ssub.s32 256, 256
      %16 = vsyncadd [#allocation4], %s15
      %s17 = smul.addr %s13, 128
      %s18 = scalar_lea.hbm %s0, %s17
      %s19 = sshll.u32 [#allocation3], 4
      %s20 = int_to_ptr.vmem [resolvable:$true] %s19
      %25 = dma.hbm_to_vmem [thread:$0]  %s18, 256, %s20, [#allocation4], 128, 128, 8
    $region5: #{tpu_custom_call.1} parent=1 // pred_fallthru
      _
    // Predicated region
    $region6: #{tpu_custom_call.1} parent=1 // pred_check
      _
    $region7: #{tpu_custom_call.1} parent=1 // pred_check_branch
      %27 = sbr.rel (0) target = $region9
    $region8: #{tpu_custom_call.1} parent=1 // pred_region
      %28 = dma.done [#allocation4], 256
    $region9: #{tpu_custom_call.1} parent=1 // pred_fallthru
      _
    %s29 = sadd.s32 0, 0
    %p30 = scmp.lt.s32.totalorder %s29, 0
    %s31 = scalar_select %p30, %s29, 0
    %s32 = smul.u32 2, %s31
    %p33 = scmp.eq.s32.totalorder 0, 0
    // Predicated region
    $region10: #{tpu_custom_call.1} parent=1 // pred_check
      %p34 = pneg %p33
    $region11: #{tpu_custom_call.1} parent=1 // pred_check_branch
      %36 = sbr.rel (%p34) target = $region13
    $region12: #{tpu_custom_call.1} parent=1 // pred_region
      %37 = vst [vmem:[#allocation2] sm:$0xff] 0.0
      %38 = vst [vmem:[#allocation2 + $0x8] sm:$0xff] 0.0
    $region13: #{tpu_custom_call.1} parent=1 // pred_fallthru
      _
    %v39 = vld [vmem:[#allocation3] sm:$0xff]
    %v40 = vld [vmem:[#allocation3 + $0x8] sm:$0xff]
    %v41 = vand.u32 2147483647, %v39
    %v42 = vand.u32 2147483647, %v40
    %v43 = vld [vmem:[#allocation2] sm:$0xff]
    %v44 = vld [vmem:[#allocation2 + $0x8] sm:$0xff]
    %v45 = vadd.f32 %v43, %v41
    %v46 = vadd.f32 %v44, %v42
    %47 = vst [vmem:[#allocation2] sm:$0xff] %v45
    %48 = vst [vmem:[#allocation2 + $0x8] sm:$0xff] %v46
    // Predicated region
    $region14: #{tpu_custom_call.1} parent=1 // pred_check
      %p49 = pneg %p33
    $region15: #{tpu_custom_call.1} parent=1 // pred_check_branch
      %51 = sbr.rel (%p49) target = $region17
    $region16: #{tpu_custom_call.1} parent=1 // pred_region
      %v52 = vld [vmem:[#allocation2] sm:$0xff]
      %v53 = vld [vmem:[#allocation2 + $0x8] sm:$0xff]
      %v54 = vadd.f32 %v52, %v53
      %55 = vadd.xlane.f32.xlu0 %v54
      %v56 = vpop.xlane.xlu0 %55
      %v57 = vrot.slane %v56, 4
      %v58 = vadd.f32 %v56, %v57
      %v59 = vrot.slane %v58, 2
      %v60 = vadd.f32 %v58, %v59
      %v61 = vrot.slane %v60, 1
      %v62 = vadd.f32 %v60, %v61
      %s63 = vtos %v62
      %s64 = scalar_lea.smem [#allocation6], 0
      %65 = sst [smem:[%s64]] %s63
    $region17: #{tpu_custom_call.1} parent=1 // pred_fallthru
      _
    // Predicated region
    $region18: #{tpu_custom_call.1} parent=1 // pred_check
      _
    $region19: #{tpu_custom_call.1} parent=1 // pred_check_branch
      %67 = sbr.rel (0) target = $region21
    $region20: #{tpu_custom_call.1} parent=1 // pred_region
      %s69 = ssub.s32 16, 16
      %70 = vsyncadd [#allocation5], %s69
      %73 = dma.smem_to_hbm [#allocation6], 16, %s1, [#allocation5]
    $region21: #{tpu_custom_call.1} parent=1 // pred_fallthru
      _
    // Predicated region
    $region22: #{tpu_custom_call.1} parent=1 // pred_check
      _
    $region23: #{tpu_custom_call.1} parent=1 // pred_check_branch
      %75 = sbr.rel (0) target = $region25
    $region24: #{tpu_custom_call.1} parent=1 // pred_region
      %76 = dma.done [#allocation5], 16
    $region25: #{tpu_custom_call.1} parent=1 // pred_fallthru
      _
    %77 = sfence
    %78 = vsyncpa [#allocation4], 1
    %79 = vsyncpa [#allocation5], 1

</llo_original>
